<compile_context>
chip_gen: v7x
topology: tpu7x:2x2x1
jax: 0.10.0
libtpu: 0.0.40
codegen_flags: <defaults>
</compile_context>

<pallas_src>
import jax
import jax.numpy as jnp
from jax.experimental import pallas as pl
from jax.experimental.pallas import tpu as pltpu


_LANE = 128
_TARGET_BLOCK_BYTES = 4 * 1024 * 1024     # ~4 MiB per buffer per block
_VMEM_LIMIT_BYTES = 48 * 1024 * 1024      # 2 bufs x (in+out) x 4 MiB + headroom;
                                          # < 64 MiB (v7x physical), << 128 MiB (v5e/v6e)


def _swish_kernel(beta_ref, x_ref, o_ref):
    # beta lives in SMEM: scalar learnable parameter (loop-invariant).
    beta = beta_ref[0]
    x = x_ref[...].astype(jnp.float32)
    o_ref[...] = (x * jax.nn.sigmoid(beta * x)).astype(o_ref.dtype)


def _pick_block_lanes(lanes, itemsize, sub):
    """Largest legal lane-block: full extent if a minimal block fits the target,
    else the biggest 128-multiple candidate that divides `lanes` exactly."""
    if lanes * itemsize * sub <= _TARGET_BLOCK_BYTES:
        return lanes
    for cand in (32768, 16384, 8192, 4096, 2048, 1024, 512, 256, 128):
        if lanes % cand == 0:
            return cand
    return lanes  # unreachable: `lanes` is always a multiple of 128 here


def _swish_2d(x2d, beta_arr):
    """Run the kernel over a (rows, lanes) slab; lanes is a multiple of 128."""
    rows, lanes = x2d.shape
    itemsize = jnp.dtype(x2d.dtype).itemsize
    sub = max(8, 32 // itemsize)  # sublane packing granularity per dtype

    block_lanes = _pick_block_lanes(lanes, itemsize, sub)
    lane_blocks = pl.cdiv(lanes, block_lanes)

    block_rows = max(sub, _TARGET_BLOCK_BYTES // (block_lanes * itemsize))
    block_rows = (block_rows // sub) * sub
    if block_rows >= rows:
        block_rows = rows  # full extent is always a legal block shape

    # v7x has 2 TensorCores per chip: a single-step grid leaves one idle.
    # Split into >= 2 row blocks when the array is large enough to matter.
    if (lane_blocks * pl.cdiv(rows, block_rows) < 2
            and rows >= 2 * sub
            and rows * lanes * itemsize >= 2 * 1024 * 1024):
        block_rows = ((rows // 2) // sub) * sub

    grid = (pl.cdiv(rows, block_rows), lane_blocks)

    return pl.pallas_call(
        _swish_kernel,
        out_shape=jax.ShapeDtypeStruct((rows, lanes), x2d.dtype),
        grid_spec=pltpu.PrefetchScalarGridSpec(
            num_scalar_prefetch=0,
            grid=grid,
            in_specs=[
                pl.BlockSpec(memory_space=pltpu.SMEM),                       # beta
                pl.BlockSpec((block_rows, block_lanes), lambda i, j: (i, j)),  # x tile
            ],
            out_specs=pl.BlockSpec((block_rows, block_lanes), lambda i, j: (i, j)),
        ),
        compiler_params=pltpu.CompilerParams(
            dimension_semantics=("parallel", "parallel"),
            vmem_limit_bytes=_VMEM_LIMIT_BYTES,
        ),
    )(beta_arr, x2d)


def swish(x: jax.Array, beta: jax.Array) -> jax.Array:
    """Elementwise Swish with learnable scalar beta, computed in a Pallas kernel."""
    orig_shape = x.shape
    dtype = x.dtype
    total = x.size
    beta_arr = jnp.asarray(beta, dtype=jnp.float32).reshape(1)

    if total == 0:
        return x

    # Path 1: last dim already lane-aligned -> collapse leading dims only
    # (layout-preserving reshape, no relayout copy in the HLO).
    if x.ndim >= 2 and orig_shape[-1] % _LANE == 0:
        lanes = orig_shape[-1]
        out = _swish_2d(x.reshape(total // lanes, lanes), beta_arr)
        return out.reshape(orig_shape)

    # Path 2: element count divides a lane-dense width -> flat 2D slab.
    x_flat = jnp.ravel(x)
    for cand in (4096, 2048, 1024, 512, 256, 128):
        if total % cand == 0:
            out = _swish_2d(x_flat.reshape(total // cand, cand), beta_arr)
            return out.reshape(orig_shape)

    # Ragged tail: no pad/slice round trips.  Divisible prefix goes through the
    # kernel; the (<128-element) tail is handled by plain XLA.
    prefix = (total // _LANE) * _LANE
    if prefix == 0:
        xf = x_flat.astype(jnp.float32)
        y = (xf * jax.nn.sigmoid(beta_arr[0] * xf)).astype(dtype)
        return y.reshape(orig_shape)
    head = _swish_2d(x_flat[:prefix].reshape(prefix // _LANE, _LANE), beta_arr)
    tail = x_flat[prefix:].astype(jnp.float32)
    tail = (tail * jax.nn.sigmoid(beta_arr[0] * tail)).astype(dtype)
    return jnp.concatenate([head.reshape(prefix), tail]).reshape(orig_shape)


if __name__ == "__main__":
    key = jax.random.PRNGKey(0)

    # NCHW input as in the PyTorch convention: batch=2, channels=4, spatial=16x16
    x = jax.random.normal(key, (2, 4, 16, 16), dtype=jnp.float32)
    # Deterministic parameter init matching nn.Parameter(torch.tensor(1.0))
    beta = jnp.float32(1.0)

    out = jax.block_until_ready(swish(x, beta))
    ref = x * jax.nn.sigmoid(beta * x)
    assert out.shape == x.shape and out.dtype == x.dtype
    assert jnp.max(jnp.abs(out - ref)) < 1e-6

    # bf16 + ragged-shape coverage (exercises the prefix-kernel + XLA-tail path).
    xb = jax.random.normal(jax.random.PRNGKey(1), (5, 7, 11), dtype=jnp.bfloat16)
    outb = jax.block_until_ready(swish(xb, beta))
    xbf = xb.astype(jnp.float32)
    refb = (xbf * jax.nn.sigmoid(beta * xbf)).astype(jnp.bfloat16)
    assert outb.shape == xb.shape and outb.dtype == xb.dtype
    assert jnp.max(jnp.abs(outb.astype(jnp.float32) - refb.astype(jnp.float32))) < 2e-2

    print("KERNEL_OK")
</pallas_src>

<mosaic_0001>
module attributes {stable_mosaic.version = 11 : i64} {
  func.func @_swish_kernel(%arg0: i32, %arg1: i32, %arg2: memref<1xf32, #tpu.memory_space<smem>>, %arg3: memref<1x2048xf32, #tpu.memory_space<vmem>>, %arg4: memref<1x2048xf32, #tpu.memory_space<vmem>>) attributes {dimension_semantics = [#tpu.dimension_semantics<parallel>, #tpu.dimension_semantics<parallel>], iteration_bounds = array<i64: 1, 1>, scalar_prefetch = 0 : i64, scratch_operands = 0 : i64, tpu.core_type = #tpu.core_type<tc>, window_params = [{transform_indices = @transform_0, window_bounds = array<i64: 1>}, {transform_indices = @transform_1, window_bounds = array<i64: 1, 2048>}, {transform_indices = @transform_2, window_bounds = array<i64: 1, 2048>}]} {
    %c0 = arith.constant 0 : index
    %0 = memref.load %arg2[%c0] : memref<1xf32, #tpu.memory_space<smem>>
    %c0_0 = arith.constant 0 : index
    %c0_1 = arith.constant 0 : index
    %1 = vector.load %arg3[%c0_0, %c0_1] : memref<1x2048xf32, #tpu.memory_space<vmem>>, vector<1x2048xf32>
    %2 = vector.broadcast %0 : f32 to vector<1x2048xf32>
    %3 = arith.mulf %2, %1 : vector<1x2048xf32>
    %4 = arith.negf %3 : vector<1x2048xf32>
    %5 = math.exp %4 : vector<1x2048xf32>
    %cst = arith.constant 1.000000e+00 : f32
    %6 = vector.broadcast %cst : f32 to vector<1x2048xf32>
    %7 = arith.addf %6, %5 : vector<1x2048xf32>
    %8 = arith.divf %6, %7 : vector<1x2048xf32>
    %9 = arith.mulf %1, %8 : vector<1x2048xf32>
    %c0_2 = arith.constant 0 : index
    %c0_3 = arith.constant 0 : index
    %10 = vector.load %arg4[%c0_2, %c0_3] : memref<1x2048xf32, #tpu.memory_space<vmem>>, vector<1x2048xf32>
    tpu.vector_store %arg4[%c0_2, %c0_3], %9 {strides = array<i32>} : memref<1x2048xf32, #tpu.memory_space<vmem>>, vector<1x2048xf32>,
    return
  }
  func.func @transform_0(%arg0: i32, %arg1: i32) -> i32 {
    %c0_i32 = arith.constant 0 : i32
    %c0_i32_0 = arith.constant 0 : i32
    return %c0_i32 : i32
  }
  func.func @transform_1(%arg0: i32, %arg1: i32) -> (i32, i32) {
    %c0_i32 = arith.constant 0 : i32
    return %arg0, %arg1 : i32, i32
  }
  func.func @transform_2(%arg0: i32, %arg1: i32) -> (i32, i32) {
    %c0_i32 = arith.constant 0 : i32
    return %arg0, %arg1 : i32, i32
  }
}

</mosaic_0001>

<llo_original>
// kernel: tpu_custom_call.1
$region0: #{tpu_custom_call.1}
  #allocation0 [shape = 'u32[]', space=smem, size = 0x4, offset = 0x4, fixed_abs, tag = 'smem constant byte address 0x4 - core index']
  #allocation1 [shape = 'u32[144,128]{1,0:T(1,128)}', space=vmem, size = 0x12000, scoped, tag = 'internal scratch']
  #allocation2 [shape = 'f32[1]{0:T(128)S(6)}', space=smem, size = 0x200, scoped, tag = 'scoped memory for tpu_custom_call.1']
  %s0 = inlined_call_operand.<no memory space> [shape: f32[1], index: 0, kind: input, shape index: {}]
  %s1 = inlined_call_operand.hbm [shape: f32[1,2048], index: 1, kind: input, shape index: {}]
  %s2 = inlined_call_operand.hbm [shape: f32[1,2048], index: 2, kind: output, shape index: {}]
  %s3 = sld [smem:[#allocation0]]
  $region22: #{tpu_custom_call.1} parent=0
    _
  %s5 = ssub.s32 1, %s3
  %s6 = scalar_select 0, %s5, %s3
  %7 = sst [smem:[#allocation2]] %s0
  $region1: #{tpu_custom_call.1} parent=0
    #allocation3 [shape = 'u8[8192]{0}', space=vmem, size = 0x2000, scoped, tag = 'input window, operand 1, single buffered']
    #allocation4 [shape = 's32[1]{0}', space=sflag, size = 0x4, scoped, tag = 'scoped memory for tpu_custom_call.1']
    #allocation5 [shape = 's32[1]{0}', space=sflag, size = 0x4, scoped, tag = 'scoped memory for tpu_custom_call.1']
    #allocation6 [shape = 'u8[8192]{0}', space=vmem, size = 0x2000, scoped, tag = 'output window, operand 0, single buffered']
    %8 = vsyncpa [#allocation4], 0
    %9 = vsyncpa [#allocation5], 0
    // Predicated region
    $region2: #{tpu_custom_call.1} parent=1 // pred_check
      _
    $region3: #{tpu_custom_call.1} parent=1 // pred_check_branch
      %11 = sbr.rel (0) target = $region5
    $region4: #{tpu_custom_call.1} parent=1 // pred_region
      _
    $region5: #{tpu_custom_call.1} parent=1 // pred_fallthru
      _
    // Predicated region
    $region6: #{tpu_custom_call.1} parent=1 // pred_check
      _
    $region7: #{tpu_custom_call.1} parent=1 // pred_check_branch
      %13 = sbr.rel (0) target = $region9
    $region8: #{tpu_custom_call.1} parent=1 // pred_region
      %s15 = ssub.s32 256, 256
      %16 = vsyncadd [#allocation4], %s15
      %s18 = sshll.u32 [#allocation3], 4
      %s19 = int_to_ptr.vmem [resolvable:$true] %s18
      %21 = dma.hbm_to_vmem [thread:$0]  %s1, 256, %s19, [#allocation4]
    $region9: #{tpu_custom_call.1} parent=1 // pred_fallthru
      _
    // Predicated region
    $region10: #{tpu_custom_call.1} parent=1 // pred_check
      _
    $region11: #{tpu_custom_call.1} parent=1 // pred_check_branch
      %23 = sbr.rel (0) target = $region13
    $region12: #{tpu_custom_call.1} parent=1 // pred_region
      %24 = dma.done [#allocation4], 256
    $region13: #{tpu_custom_call.1} parent=1 // pred_fallthru
      _
    %s25 = sld [smem:[#allocation2]]
    %v26 = vld [vmem:[#allocation3] sm:$0xff]
    %v27 = vld [vmem:[#allocation3 + $0x8] sm:$0xff]
    %v28 = vstv %s25
    %v29 = vmul.f32 %v28, %v26
    %v30 = vmul.f32 %v28, %v27
    %v31 = vxor.u32 %v29, 2147483648
    %v32 = vxor.u32 %v30, 2147483648
    %v33 = vmul.f32 %v31, 1.442695
    %v34 = vpow.pop %v33
    %v35 = vmul.f32 %v32, 1.442695
    %v36 = vpow.pop %v35
    %v37 = vadd.f32 %v34, 1.0
    %v38 = vadd.f32 %v36, 1.0
    %v39 = vrcp.pop %v37
    %v40 = vmul.f32 1.0, %v39
    %v41 = vrcp.pop %v38
    %v42 = vmul.f32 1.0, %v41
    %v43 = vmul.f32 %v26, %v40
    %v44 = vmul.f32 %v27, %v42
    %45 = vst [vmem:[#allocation6] sm:$0xff] %v43
    %46 = vst [vmem:[#allocation6 + $0x8] sm:$0xff] %v44
    // Predicated region
    $region14: #{tpu_custom_call.1} parent=1 // pred_check
      _
    $region15: #{tpu_custom_call.1} parent=1 // pred_check_branch
      %48 = sbr.rel (0) target = $region17
    $region16: #{tpu_custom_call.1} parent=1 // pred_region
      %s50 = ssub.s32 256, 256
      %51 = vsyncadd [#allocation5], %s50
      %s53 = sshll.u32 [#allocation6], 4
      %s54 = int_to_ptr.vmem [resolvable:$true] %s53
      %56 = dma.vmem_to_hbm [thread:$0]  %s54, 256, %s2, [#allocation5]
    $region17: #{tpu_custom_call.1} parent=1 // pred_fallthru
      _
    // Predicated region
    $region18: #{tpu_custom_call.1} parent=1 // pred_check
      _
    $region19: #{tpu_custom_call.1} parent=1 // pred_check_branch
      %58 = sbr.rel (0) target = $region21
    $region20: #{tpu_custom_call.1} parent=1 // pred_region
      %59 = dma.done [#allocation5], 256
    $region21: #{tpu_custom_call.1} parent=1 // pred_fallthru
      _
    %60 = vsyncpa [#allocation4], 1
    %61 = vsyncpa [#allocation5], 1

</llo_original>
